<compile_context>
chip_gen: v5e
topology: v5e:2x2
jax: 0.10.0
libtpu: 0.0.40
codegen_flags: <defaults>
</compile_context>

<pallas_src>
import functools

import jax
import jax.numpy as jnp
import numpy as np
from jax import lax
from jax.experimental import pallas as pl
from jax.experimental.pallas import tpu as pltpu

VMEM_SPEC = pl.BlockSpec(memory_space=pltpu.MemorySpace.VMEM)


# --------------------------- fused forward kernel ----------------------------
def _fused_gcn_kernel(a_ref, xw0_ref, onehot_ref, invcnt_ref,
                      b0_ref, ws_ref, bs_ref,
                      w1m_ref, w1x_ref, w1a_ref, b1_ref,
                      w2_ref, b2_ref, w3_ref, b3_ref,
                      o_ref, h_scratch, *, n_shared):
    f32 = jnp.float32
    bf16 = jnp.bfloat16
    n_nodes, hp = h_scratch.shape

    a = a_ref[...]                    # bf16 A_hat, VMEM-resident for every layer

    # ---- GCN layer 0: relu(A_hat @ (X W0) + b0); X@W0 precomputed in the wrapper
    h0 = jnp.dot(a, xw0_ref[...], preferred_element_type=f32) + b0_ref[...]
    h_scratch[...] = jnp.maximum(h0, 0.0).astype(bf16)

    # ---- GCN layers 1..n_layers-1 (shared W/b), fully unrolled.
    # Loads + bias broadcast hoisted out of the loop body (no per-iteration re-issue).
    ws = ws_ref[...]                                          # bf16 [Hp, Hp]
    bs_b = jnp.broadcast_to(bs_ref[...], (n_nodes, hp))       # f32  [N, Hp], built once

    def body(_, carry):
        hw = jnp.dot(h_scratch[...], ws, preferred_element_type=f32).astype(bf16)
        hs = jnp.dot(a, hw, preferred_element_type=f32) + bs_b
        h_scratch[...] = jnp.maximum(hs, 0.0).astype(bf16)
        return carry

    lax.fori_loop(0, n_shared, body, 0, unroll=True)

    # ---- global pools (add via MXU, mean via precomputed 1/count, max via onehot mask)
    oh = onehot_ref[...]                                              # bf16 [G, N]
    add_p = jnp.dot(oh, h_scratch[...], preferred_element_type=f32)   # [G, Hp] add pool
    mean_p = add_p * invcnt_ref[...]                                  # [G, Hp] mean pool
    h_f32 = h_scratch[...].astype(f32)
    # post-ReLU h>=0, so onehot*h max is exact; empty/padded graphs yield 0 for free
    max_p = jnp.max(oh.astype(f32)[:, :, None] * h_f32[None, :, :], axis=1)  # [G, Hp]
    # TODO(synk): for large G, replace the [G,N,Hp] broadcast with per-graph pl.ds
    #             row-slice reductions via PrefetchScalarGridSpec scalar prefetch.

    # ---- MLP head: [mean|max|add] @ W1 via host-pre-split W1 slabs (no concat/slice)
    z = (jnp.dot(mean_p, w1m_ref[...], preferred_element_type=f32)
         + jnp.dot(max_p, w1x_ref[...], preferred_element_type=f32)
         + jnp.dot(add_p, w1a_ref[...], preferred_element_type=f32)
         + b1_ref[...])
    z = jnp.maximum(z, 0.0)
    z = jnp.maximum(
        jnp.dot(z, w2_ref[...], preferred_element_type=f32) + b2_ref[...], 0.0)
    z = jnp.dot(z, w3_ref[...], preferred_element_type=f32) + b3_ref[...]
    # branch-free numerically stable sigmoid: exp(min(z,0)) / (1 + exp(-|z|))
    o_ref[...] = jnp.exp(jnp.minimum(z, 0.0)) / (1.0 + jnp.exp(-jnp.abs(z)))


# --------------------------------- glue --------------------------------------
def build_normalized_adjacency(edge_index, n_nodes):
    # A_hat = D^-1/2 (A + I) D^-1/2   (GCNConv default: add_self_loops + symmetric norm)
    a = jnp.zeros((n_nodes, n_nodes), jnp.float32)
    a = a.at[edge_index[1], edge_index[0]].add(1.0)
    a = a + jnp.eye(n_nodes, dtype=jnp.float32)
    deg = a.sum(axis=1)
    dinv = jax.lax.rsqrt(deg)
    return dinv[:, None] * a * dinv[None, :]


def _round_up(x, m):
    return -(-x // m) * m


def _padded_vmem_bytes(shape, dtype):
    itemsize = jnp.dtype(dtype).itemsize
    shape = list(shape)
    if not shape:
        return 4
    shape[-1] = _round_up(shape[-1], 128)
    if len(shape) >= 2:
        shape[-2] = _round_up(shape[-2], 8 * (4 // itemsize))
    n = 1
    for s in shape:
        n *= s
    return n * itemsize


@functools.partial(jax.jit, static_argnames=("n_layers", "n_graphs"))
def gcn_forward(x, edge_index, batch, params, n_layers, n_graphs):
    f32, bf16 = jnp.float32, jnp.bfloat16
    n_nodes = x.shape[0]
    hidden = params["w0"].shape[1]
    hp = _round_up(hidden, 128)            # pad hidden so conv matmuls fill MXU lanes

    a_hat = build_normalized_adjacency(edge_index, n_nodes).astype(bf16)

    onehot_f32 = (batch[None, :] == jnp.arange(n_graphs)[:, None]).astype(f32)  # [G, N]
    counts = onehot_f32.sum(axis=1, keepdims=True)                              # [G, 1]
    inv_counts = jnp.where(counts > 0.0, 1.0 / counts, 0.0)                     # [G, 1]
    onehot = onehot_f32.astype(bf16)

    def pad_cols(a, target):
        return jnp.pad(a, ((0, 0), (0, target - a.shape[1])))

    def pad_rows(a, target):
        return jnp.pad(a, ((0, target - a.shape[0]), (0, 0)))

    # layer 0: X @ W0 in plain XLA (K=input_dim too small for the MXU), padded to Hp cols
    xw0 = pad_cols(x.astype(f32) @ params["w0"], hp).astype(bf16)                # [N, Hp]
    b0 = pad_cols(params["b0"], hp)                                              # [1, Hp]
    ws = pad_rows(pad_cols(params["ws"], hp), hp).astype(bf16)                   # [Hp, Hp]
    bs = pad_cols(params["bs"], hp)                                              # [1, Hp]
    # pre-split W1 into [mean | max | add] slabs, rows zero-padded to Hp
    w1m = pad_rows(params["w1"][0:hidden, :], hp)                                # [Hp, 3H]
    w1x = pad_rows(params["w1"][hidden:2 * hidden, :], hp)
    w1a = pad_rows(params["w1"][2 * hidden:3 * hidden, :], hp)

    operands = (a_hat, xw0, onehot, inv_counts, b0, ws, bs,
                w1m, w1x, w1a, params["b1"], params["w2"], params["b2"],
                params["w3"], params["b3"])

    # scoped-VMEM budget: resident operands + h scratch + max-pool temp, with headroom
    est = sum(_padded_vmem_bytes(op.shape, op.dtype) for op in operands)
    est += _padded_vmem_bytes((n_nodes, hp), bf16)                # h_scratch
    est += _padded_vmem_bytes((n_graphs, n_nodes, hp), f32)       # max-pool broadcast temp
    est += 3 * _padded_vmem_bytes((n_nodes, hp), f32)             # per-layer f32 temps
    vmem_limit = int(min(max(est * 3 // 2, 32 << 20), 100 << 20))

    kernel = functools.partial(_fused_gcn_kernel, n_shared=n_layers - 1)

    # TODO(synk): for N beyond VMEM residency (~4k f32 / ~6k bf16 on v7x's 64 MiB, ~2x that
    #             on v5e/v6e) switch to streaming A_hat tiles from HBM with a "parallel"
    #             node-row grid (also engages both v7x TensorCores); here A_hat is resident.
    return pl.pallas_call(
        kernel,
        out_shape=jax.ShapeDtypeStruct((n_graphs, 1), f32),
        in_specs=[VMEM_SPEC] * len(operands),
        out_specs=VMEM_SPEC,
        scratch_shapes=[pltpu.VMEM((n_nodes, hp), bf16)],
        compiler_params=pltpu.CompilerParams(vmem_limit_bytes=vmem_limit),
    )(*operands)


def init_params(key, input_dim, hidden):
    ks = jax.random.split(key, 10)

    def lin(k, fan_in, fan_out):
        return (jax.random.normal(k, (fan_in, fan_out), jnp.float32) /
                jnp.sqrt(jnp.float32(fan_in)))

    return {
        # GCNConv layer 0 and shared GCNConv layer (layers 1..n-1)
        "w0": lin(ks[0], input_dim, hidden),
        "b0": 0.1 * jax.random.normal(ks[1], (1, hidden), jnp.float32),
        "ws": lin(ks[2], hidden, hidden),
        "bs": 0.1 * jax.random.normal(ks[3], (1, hidden), jnp.float32),
        # MLP head: Linear(3H,3H) -> ReLU -> Linear(3H,H) -> ReLU -> Linear(H,1)
        "w1": lin(ks[4], 3 * hidden, 3 * hidden),
        "b1": 0.1 * jax.random.normal(ks[5], (1, 3 * hidden), jnp.float32),
        "w2": lin(ks[6], 3 * hidden, hidden),
        "b2": 0.1 * jax.random.normal(ks[7], (1, hidden), jnp.float32),
        "w3": lin(ks[8], hidden, 1),
        "b3": 0.1 * jax.random.normal(ks[9], (1, 1), jnp.float32),
    }


if __name__ == "__main__":
    input_dim, hidden, n_layers = 4, 32, 3
    nodes_per_graph, n_graphs = 8, 2
    n_nodes = nodes_per_graph * n_graphs

    # deterministic synthetic graph batch: 2 undirected ring graphs of 8 nodes each
    src, dst = [], []
    for g in range(n_graphs):
        off = g * nodes_per_graph
        for i in range(nodes_per_graph):
            j = (i + 1) % nodes_per_graph
            src += [off + i, off + j]
            dst += [off + j, off + i]
    edge_index = jnp.array(np.stack([src, dst]), dtype=jnp.int32)           # [2, E]
    batch = jnp.array(np.repeat(np.arange(n_graphs), nodes_per_graph),
                      dtype=jnp.int32)                                       # [N]

    key = jax.random.PRNGKey(0)
    kx, kp = jax.random.split(key)
    x = jax.random.normal(kx, (n_nodes, input_dim), jnp.float32)             # data.x
    params = init_params(kp, input_dim, hidden)

    out = gcn_forward(x, edge_index, batch, params,
                      n_layers=n_layers, n_graphs=n_graphs)
    out = jax.block_until_ready(out)
    assert out.shape == (n_graphs, 1)
    assert bool(jnp.all(jnp.isfinite(out)))
    assert bool(jnp.all((out >= 0.0) & (out <= 1.0)))
    print("KERNEL_OK")
</pallas_src>

<mosaic_0001>
module attributes {stable_mosaic.version = 11 : i64} {
  func.func @_fused_gcn_kernel(%arg0: memref<16x16xbf16, #tpu.memory_space<vmem>>, %arg1: memref<16x128xbf16, #tpu.memory_space<vmem>>, %arg2: memref<2x16xbf16, #tpu.memory_space<vmem>>, %arg3: memref<2x1xf32, #tpu.memory_space<vmem>>, %arg4: memref<1x128xf32, #tpu.memory_space<vmem>>, %arg5: memref<128x128xbf16, #tpu.memory_space<vmem>>, %arg6: memref<1x128xf32, #tpu.memory_space<vmem>>, %arg7: memref<128x96xf32, #tpu.memory_space<vmem>>, %arg8: memref<128x96xf32, #tpu.memory_space<vmem>>, %arg9: memref<128x96xf32, #tpu.memory_space<vmem>>, %arg10: memref<1x96xf32, #tpu.memory_space<vmem>>, %arg11: memref<96x32xf32, #tpu.memory_space<vmem>>, %arg12: memref<1x32xf32, #tpu.memory_space<vmem>>, %arg13: memref<32x1xf32, #tpu.memory_space<vmem>>, %arg14: memref<1x1xf32, #tpu.memory_space<vmem>>, %arg15: memref<2x1xf32, #tpu.memory_space<vmem>>, %arg16: memref<16x128xbf16, #tpu.memory_space<vmem>>) attributes {dimension_semantics = [], scalar_prefetch = 0 : i64, scratch_operands = 1 : i64, tpu.core_type = #tpu.core_type<tc>} {
    %c0 = arith.constant 0 : index
    %c0_0 = arith.constant 0 : index
    %0 = vector.load %arg0[%c0, %c0_0] : memref<16x16xbf16, #tpu.memory_space<vmem>>, vector<16x16xbf16>
    %c0_1 = arith.constant 0 : index
    %c0_2 = arith.constant 0 : index
    %1 = vector.load %arg1[%c0_1, %c0_2] : memref<16x128xbf16, #tpu.memory_space<vmem>>, vector<16x128xbf16>
    %cst = arith.constant dense<0.000000e+00> : vector<16x128xf32>
    %2 = tpu.matmul %0, %1, %cst {dimension_numbers = #tpu.dot_dimension_numbers<[1], [0], [0], [1], [0, 0, 1, 1], [], []>} : vector<16x16xbf16>, vector<16x128xbf16>, vector<16x128xf32> -> vector<16x128xf32>
    %c0_3 = arith.constant 0 : index
    %c0_4 = arith.constant 0 : index
    %3 = vector.load %arg4[%c0_3, %c0_4] : memref<1x128xf32, #tpu.memory_space<vmem>>, vector<1x128xf32>
    %4 = vector.broadcast %3 : vector<1x128xf32> to vector<16x128xf32>
    %5 = arith.addf %2, %4 : vector<16x128xf32>
    %cst_5 = arith.constant 0.000000e+00 : f32
    %6 = vector.broadcast %cst_5 : f32 to vector<16x128xf32>
    %7 = arith.maximumf %5, %6 : vector<16x128xf32>
    %8 = arith.truncf %7 : vector<16x128xf32> to vector<16x128xbf16>
    %c0_6 = arith.constant 0 : index
    %c0_7 = arith.constant 0 : index
    %9 = vector.load %arg16[%c0_6, %c0_7] : memref<16x128xbf16, #tpu.memory_space<vmem>>, vector<16x128xbf16>
    tpu.vector_store %arg16[%c0_6, %c0_7], %8 {strides = array<i32>} : memref<16x128xbf16, #tpu.memory_space<vmem>>, vector<16x128xbf16>,
    %c0_8 = arith.constant 0 : index
    %c0_9 = arith.constant 0 : index
    %10 = vector.load %arg5[%c0_8, %c0_9] : memref<128x128xbf16, #tpu.memory_space<vmem>>, vector<128x128xbf16>
    %c0_10 = arith.constant 0 : index
    %c0_11 = arith.constant 0 : index
    %11 = vector.load %arg6[%c0_10, %c0_11] : memref<1x128xf32, #tpu.memory_space<vmem>>, vector<1x128xf32>
    %12 = vector.shape_cast %11 : vector<1x128xf32> to vector<1x128xf32>
    %13 = vector.broadcast %12 : vector<1x128xf32> to vector<16x128xf32>
    %c0_i32 = arith.constant 0 : i32
    %c0_12 = arith.constant 0 : index
    %c0_13 = arith.constant 0 : index
    %14 = vector.load %arg16[%c0_12, %c0_13] : memref<16x128xbf16, #tpu.memory_space<vmem>>, vector<16x128xbf16>
    %cst_14 = arith.constant dense<0.000000e+00> : vector<16x128xf32>
    %15 = tpu.matmul %14, %10, %cst_14 {dimension_numbers = #tpu.dot_dimension_numbers<[1], [0], [0], [1], [0, 0, 1, 1], [], []>} : vector<16x128xbf16>, vector<128x128xbf16>, vector<16x128xf32> -> vector<16x128xf32>
    %16 = arith.truncf %15 : vector<16x128xf32> to vector<16x128xbf16>
    %cst_15 = arith.constant dense<0.000000e+00> : vector<16x128xf32>
    %17 = tpu.matmul %0, %16, %cst_15 {dimension_numbers = #tpu.dot_dimension_numbers<[1], [0], [0], [1], [0, 0, 1, 1], [], []>} : vector<16x16xbf16>, vector<16x128xbf16>, vector<16x128xf32> -> vector<16x128xf32>
    %18 = arith.addf %17, %13 : vector<16x128xf32>
    %cst_16 = arith.constant 0.000000e+00 : f32
    %19 = vector.broadcast %cst_16 : f32 to vector<16x128xf32>
    %20 = arith.maximumf %18, %19 : vector<16x128xf32>
    %21 = arith.truncf %20 : vector<16x128xf32> to vector<16x128xbf16>
    %c0_17 = arith.constant 0 : index
    %c0_18 = arith.constant 0 : index
    %22 = vector.load %arg16[%c0_17, %c0_18] : memref<16x128xbf16, #tpu.memory_space<vmem>>, vector<16x128xbf16>
    tpu.vector_store %arg16[%c0_17, %c0_18], %21 {strides = array<i32>} : memref<16x128xbf16, #tpu.memory_space<vmem>>, vector<16x128xbf16>,
    %c1_i32 = arith.constant 1 : i32
    %c0_19 = arith.constant 0 : index
    %c0_20 = arith.constant 0 : index
    %23 = vector.load %arg16[%c0_19, %c0_20] : memref<16x128xbf16, #tpu.memory_space<vmem>>, vector<16x128xbf16>
    %cst_21 = arith.constant dense<0.000000e+00> : vector<16x128xf32>
    %24 = tpu.matmul %23, %10, %cst_21 {dimension_numbers = #tpu.dot_dimension_numbers<[1], [0], [0], [1], [0, 0, 1, 1], [], []>} : vector<16x128xbf16>, vector<128x128xbf16>, vector<16x128xf32> -> vector<16x128xf32>
    %25 = arith.truncf %24 : vector<16x128xf32> to vector<16x128xbf16>
    %cst_22 = arith.constant dense<0.000000e+00> : vector<16x128xf32>
    %26 = tpu.matmul %0, %25, %cst_22 {dimension_numbers = #tpu.dot_dimension_numbers<[1], [0], [0], [1], [0, 0, 1, 1], [], []>} : vector<16x16xbf16>, vector<16x128xbf16>, vector<16x128xf32> -> vector<16x128xf32>
    %27 = arith.addf %26, %13 : vector<16x128xf32>
    %cst_23 = arith.constant 0.000000e+00 : f32
    %28 = vector.broadcast %cst_23 : f32 to vector<16x128xf32>
    %29 = arith.maximumf %27, %28 : vector<16x128xf32>
    %30 = arith.truncf %29 : vector<16x128xf32> to vector<16x128xbf16>
    %c0_24 = arith.constant 0 : index
    %c0_25 = arith.constant 0 : index
    %31 = vector.load %arg16[%c0_24, %c0_25] : memref<16x128xbf16, #tpu.memory_space<vmem>>, vector<16x128xbf16>
    tpu.vector_store %arg16[%c0_24, %c0_25], %30 {strides = array<i32>} : memref<16x128xbf16, #tpu.memory_space<vmem>>, vector<16x128xbf16>,
    %c0_26 = arith.constant 0 : index
    %c0_27 = arith.constant 0 : index
    %32 = vector.load %arg2[%c0_26, %c0_27] : memref<2x16xbf16, #tpu.memory_space<vmem>>, vector<2x16xbf16>
    %c0_28 = arith.constant 0 : index
    %c0_29 = arith.constant 0 : index
    %33 = vector.load %arg16[%c0_28, %c0_29] : memref<16x128xbf16, #tpu.memory_space<vmem>>, vector<16x128xbf16>
    %cst_30 = arith.constant dense<0.000000e+00> : vector<2x128xf32>
    %34 = tpu.matmul %32, %33, %cst_30 {dimension_numbers = #tpu.dot_dimension_numbers<[1], [0], [0], [1], [0, 0, 1, 1], [], []>} : vector<2x16xbf16>, vector<16x128xbf16>, vector<2x128xf32> -> vector<2x128xf32>
    %c0_31 = arith.constant 0 : index
    %c0_32 = arith.constant 0 : index
    %35 = vector.load %arg3[%c0_31, %c0_32] : memref<2x1xf32, #tpu.memory_space<vmem>>, vector<2x1xf32>
    %36 = vector.broadcast %35 : vector<2x1xf32> to vector<2x128xf32>
    %37 = arith.mulf %34, %36 : vector<2x128xf32>
    %c0_33 = arith.constant 0 : index
    %c0_34 = arith.constant 0 : index
    %38 = vector.load %arg16[%c0_33, %c0_34] : memref<16x128xbf16, #tpu.memory_space<vmem>>, vector<16x128xbf16>
    %39 = arith.extf %38 : vector<16x128xbf16> to vector<16x128xf32>
    %40 = arith.extf %32 : vector<2x16xbf16> to vector<2x16xf32>
    %41 = vector.shape_cast %40 : vector<2x16xf32> to vector<2x16x1xf32>
    %42 = vector.shape_cast %39 : vector<16x128xf32> to vector<1x16x128xf32>
    %43 = vector.broadcast %41 : vector<2x16x1xf32> to vector<2x16x128xf32>
    %44 = vector.broadcast %42 : vector<1x16x128xf32> to vector<2x16x128xf32>
    %45 = arith.mulf %43, %44 : vector<2x16x128xf32>
    %cst_35 = arith.constant dense<0xFF800000> : vector<2x128xf32>
    %46 = vector.multi_reduction <maximumf>, %45, %cst_35 [1] : vector<2x16x128xf32> to vector<2x128xf32>
    %c0_36 = arith.constant 0 : index
    %c0_37 = arith.constant 0 : index
    %47 = vector.load %arg7[%c0_36, %c0_37] : memref<128x96xf32, #tpu.memory_space<vmem>>, vector<128x96xf32>
    %cst_38 = arith.constant dense<0.000000e+00> : vector<2x96xf32>
    %48 = tpu.matmul %37, %47, %cst_38 {dimension_numbers = #tpu.dot_dimension_numbers<[1], [0], [0], [1], [0, 0, 1, 1], [], []>} : vector<2x128xf32>, vector<128x96xf32>, vector<2x96xf32> -> vector<2x96xf32>
    %c0_39 = arith.constant 0 : index
    %c0_40 = arith.constant 0 : index
    %49 = vector.load %arg8[%c0_39, %c0_40] : memref<128x96xf32, #tpu.memory_space<vmem>>, vector<128x96xf32>
    %cst_41 = arith.constant dense<0.000000e+00> : vector<2x96xf32>
    %50 = tpu.matmul %46, %49, %cst_41 {dimension_numbers = #tpu.dot_dimension_numbers<[1], [0], [0], [1], [0, 0, 1, 1], [], []>} : vector<2x128xf32>, vector<128x96xf32>, vector<2x96xf32> -> vector<2x96xf32>
    %51 = arith.addf %48, %50 : vector<2x96xf32>
    %c0_42 = arith.constant 0 : index
    %c0_43 = arith.constant 0 : index
    %52 = vector.load %arg9[%c0_42, %c0_43] : memref<128x96xf32, #tpu.memory_space<vmem>>, vector<128x96xf32>
    %cst_44 = arith.constant dense<0.000000e+00> : vector<2x96xf32>
    %53 = tpu.matmul %34, %52, %cst_44 {dimension_numbers = #tpu.dot_dimension_numbers<[1], [0], [0], [1], [0, 0, 1, 1], [], []>} : vector<2x128xf32>, vector<128x96xf32>, vector<2x96xf32> -> vector<2x96xf32>
    %54 = arith.addf %51, %53 : vector<2x96xf32>
    %c0_45 = arith.constant 0 : index
    %c0_46 = arith.constant 0 : index
    %55 = vector.load %arg10[%c0_45, %c0_46] : memref<1x96xf32, #tpu.memory_space<vmem>>, vector<1x96xf32>
    %56 = vector.broadcast %55 : vector<1x96xf32> to vector<2x96xf32>
    %57 = arith.addf %54, %56 : vector<2x96xf32>
    %cst_47 = arith.constant 0.000000e+00 : f32
    %58 = vector.broadcast %cst_47 : f32 to vector<2x96xf32>
    %59 = arith.maximumf %57, %58 : vector<2x96xf32>
    %c0_48 = arith.constant 0 : index
    %c0_49 = arith.constant 0 : index
    %60 = vector.load %arg11[%c0_48, %c0_49] : memref<96x32xf32, #tpu.memory_space<vmem>>, vector<96x32xf32>
    %cst_50 = arith.constant dense<0.000000e+00> : vector<2x32xf32>
    %61 = tpu.matmul %59, %60, %cst_50 {dimension_numbers = #tpu.dot_dimension_numbers<[1], [0], [0], [1], [0, 0, 1, 1], [], []>} : vector<2x96xf32>, vector<96x32xf32>, vector<2x32xf32> -> vector<2x32xf32>
    %c0_51 = arith.constant 0 : index
    %c0_52 = arith.constant 0 : index
    %62 = vector.load %arg12[%c0_51, %c0_52] : memref<1x32xf32, #tpu.memory_space<vmem>>, vector<1x32xf32>
    %63 = vector.broadcast %62 : vector<1x32xf32> to vector<2x32xf32>
    %64 = arith.addf %61, %63 : vector<2x32xf32>
    %cst_53 = arith.constant 0.000000e+00 : f32
    %65 = vector.broadcast %cst_53 : f32 to vector<2x32xf32>
    %66 = arith.maximumf %64, %65 : vector<2x32xf32>
    %c0_54 = arith.constant 0 : index
    %c0_55 = arith.constant 0 : index
    %67 = vector.load %arg13[%c0_54, %c0_55] : memref<32x1xf32, #tpu.memory_space<vmem>>, vector<32x1xf32>
    %cst_56 = arith.constant dense<0.000000e+00> : vector<2x1xf32>
    %68 = tpu.matmul %66, %67, %cst_56 {dimension_numbers = #tpu.dot_dimension_numbers<[1], [0], [0], [1], [0, 0, 1, 1], [], []>} : vector<2x32xf32>, vector<32x1xf32>, vector<2x1xf32> -> vector<2x1xf32>
    %c0_57 = arith.constant 0 : index
    %c0_58 = arith.constant 0 : index
    %69 = vector.load %arg14[%c0_57, %c0_58] : memref<1x1xf32, #tpu.memory_space<vmem>>, vector<1x1xf32>
    %70 = vector.broadcast %69 : vector<1x1xf32> to vector<2x1xf32>
    %71 = arith.addf %68, %70 : vector<2x1xf32>
    %cst_59 = arith.constant 0.000000e+00 : f32
    %72 = vector.broadcast %cst_59 : f32 to vector<2x1xf32>
    %73 = arith.minimumf %71, %72 : vector<2x1xf32>
    %74 = math.exp %73 : vector<2x1xf32>
    %75 = math.absf %71 : vector<2x1xf32>
    %cst_60 = arith.constant 0.000000e+00 : f32
    %76 = vector.broadcast %cst_60 : f32 to vector<2x1xf32>
    %77 = arith.subf %76, %75 : vector<2x1xf32>
    %78 = math.exp %77 : vector<2x1xf32>
    %cst_61 = arith.constant 1.000000e+00 : f32
    %79 = vector.broadcast %cst_61 : f32 to vector<2x1xf32>
    %80 = arith.addf %79, %78 : vector<2x1xf32>
    %81 = arith.divf %74, %80 : vector<2x1xf32>
    %c0_62 = arith.constant 0 : index
    %c0_63 = arith.constant 0 : index
    %82 = vector.load %arg15[%c0_62, %c0_63] : memref<2x1xf32, #tpu.memory_space<vmem>>, vector<2x1xf32>
    tpu.vector_store %arg15[%c0_62, %c0_63], %81 {strides = array<i32>} : memref<2x1xf32, #tpu.memory_space<vmem>>, vector<2x1xf32>,
    return
  }
}

</mosaic_0001>

<llo_original>
// kernel: gcn_forward.1
$region0: #{gcn_forward.1}
  #allocation0 [shape = 'u32[]', space=smem, size = 0x4, offset = 0x4, fixed_abs, tag = 'smem constant byte address 0x4 - core index']
  #allocation1 [shape = 'u32[72,128]{1,0:T(1,128)}', space=vmem, size = 0x9000, scoped, tag = 'internal scratch']
  #allocation2 [shape = 'bf16[16,128]{1,0:T(8,128)(2,1)}', space=vmem, size = 0x1000, scoped, tag = 'scratch operand']
  #allocation3 [shape = 'f32[1,1]{1,0:T(1,128)S(1)}', space=vmem, size = 0x200, scoped, tag = 'scoped memory for gcn_forward.1']
  %s0 = inlined_call_operand.vmem [shape: bf16[16,16], index: 0, kind: input, shape index: {}]
  %s1 = inlined_call_operand.vmem [shape: bf16[16,128], index: 1, kind: input, shape index: {}]
  %s2 = inlined_call_operand.vmem [shape: bf16[2,16], index: 2, kind: input, shape index: {}]
  %s3 = inlined_call_operand.vmem [shape: f32[2,1], index: 3, kind: input, shape index: {}]
  %s4 = inlined_call_operand.vmem [shape: f32[1,128], index: 4, kind: input, shape index: {}]
  %s5 = inlined_call_operand.vmem [shape: bf16[128,128], index: 5, kind: input, shape index: {}]
  %s6 = inlined_call_operand.vmem [shape: f32[1,128], index: 6, kind: input, shape index: {}]
  %s7 = inlined_call_operand.vmem [shape: f32[128,96], index: 7, kind: input, shape index: {}]
  %s8 = inlined_call_operand.vmem [shape: f32[128,96], index: 8, kind: input, shape index: {}]
  %s9 = inlined_call_operand.vmem [shape: f32[128,96], index: 9, kind: input, shape index: {}]
  %s10 = inlined_call_operand.vmem [shape: f32[1,96], index: 10, kind: input, shape index: {}]
  %s11 = inlined_call_operand.vmem [shape: f32[96,32], index: 11, kind: input, shape index: {}]
  %s12 = inlined_call_operand.vmem [shape: f32[1,32], index: 12, kind: input, shape index: {}]
  %s13 = inlined_call_operand.vmem [shape: f32[32,1], index: 13, kind: input, shape index: {}]
  %s14 = inlined_call_operand.<no memory space> [shape: f32[1,1], index: 14, kind: input, shape index: {}]
  %s15 = inlined_call_operand.vmem [shape: f32[2,1], index: 15, kind: output, shape index: {}]
  %s16 = sld [smem:[#allocation0]]
  $region70: #{gcn_forward.1} parent=0
    _
  %s18 = ssub.s32 1, %s16
  %s19 = scalar_select 0, %s18, %s16
  %v20 = vstv %s14
  %21 = vst [vmem:[#allocation3] sm:$0x1] %v20
  // Predicated region
  $region2: #{gcn_forward.1} parent=0 // pred_check
    _
  $region3: #{gcn_forward.1} parent=0 // pred_check_branch
    %23 = sbr.rel (0) target = $region5
  $region4: #{gcn_forward.1} parent=0 // pred_region
    _
  $region5: #{gcn_forward.1} parent=0 // pred_fallthru
    _
  // Predicated region
  $region6: #{gcn_forward.1} parent=0 // pred_check
    _
  $region7: #{gcn_forward.1} parent=0 // pred_check_branch
    %25 = sbr.rel (0) target = $region9
  $region8: #{gcn_forward.1} parent=0 // pred_region
    _
  $region9: #{gcn_forward.1} parent=0 // pred_fallthru
    _
  // Predicated region
  $region10: #{gcn_forward.1} parent=0 // pred_check
    _
  $region11: #{gcn_forward.1} parent=0 // pred_check_branch
    %27 = sbr.rel (0) target = $region13
  $region12: #{gcn_forward.1} parent=0 // pred_region
    _
  $region13: #{gcn_forward.1} parent=0 // pred_fallthru
    _
  // Predicated region
  $region14: #{gcn_forward.1} parent=0 // pred_check
    _
  $region15: #{gcn_forward.1} parent=0 // pred_check_branch
    %29 = sbr.rel (0) target = $region17
  $region16: #{gcn_forward.1} parent=0 // pred_region
    _
  $region17: #{gcn_forward.1} parent=0 // pred_fallthru
    _
  // Predicated region
  $region18: #{gcn_forward.1} parent=0 // pred_check
    _
  $region19: #{gcn_forward.1} parent=0 // pred_check_branch
    %31 = sbr.rel (0) target = $region21
  $region20: #{gcn_forward.1} parent=0 // pred_region
    _
  $region21: #{gcn_forward.1} parent=0 // pred_fallthru
    _
  // Predicated region
  $region22: #{gcn_forward.1} parent=0 // pred_check
    _
  $region23: #{gcn_forward.1} parent=0 // pred_check_branch
    %33 = sbr.rel (0) target = $region25
  $region24: #{gcn_forward.1} parent=0 // pred_region
    _
  $region25: #{gcn_forward.1} parent=0 // pred_fallthru
    _
  // Predicated region
  $region26: #{gcn_forward.1} parent=0 // pred_check
    _
  $region27: #{gcn_forward.1} parent=0 // pred_check_branch
    %35 = sbr.rel (0) target = $region29
  $region28: #{gcn_forward.1} parent=0 // pred_region
    _
  $region29: #{gcn_forward.1} parent=0 // pred_fallthru
    _
  // Predicated region
  $region30: #{gcn_forward.1} parent=0 // pred_check
    _
  $region31: #{gcn_forward.1} parent=0 // pred_check_branch
    %37 = sbr.rel (0) target = $region33
  $region32: #{gcn_forward.1} parent=0 // pred_region
    _
  $region33: #{gcn_forward.1} parent=0 // pred_fallthru
    _
  // Predicated region
  $region34: #{gcn_forward.1} parent=0 // pred_check
    _
  $region35: #{gcn_forward.1} parent=0 // pred_check_branch
    %39 = sbr.rel (0) target = $region37
  $region36: #{gcn_forward.1} parent=0 // pred_region
    _
  $region37: #{gcn_forward.1} parent=0 // pred_fallthru
    _
  // Predicated region
  $region38: #{gcn_forward.1} parent=0 // pred_check
    _
  $region39: #{gcn_forward.1} parent=0 // pred_check_branch
    %41 = sbr.rel (0) target = $region41
  $region40: #{gcn_forward.1} parent=0 // pred_region
    _
  $region41: #{gcn_forward.1} parent=0 // pred_fallthru
    _
  // Predicated region
  $region42: #{gcn_forward.1} parent=0 // pred_check
    _
  $region43: #{gcn_forward.1} parent=0 // pred_check_branch
    %43 = sbr.rel (0) target = $region45
  $region44: #{gcn_forward.1} parent=0 // pred_region
    _
  $region45: #{gcn_forward.1} parent=0 // pred_fallthru
    _
  // Predicated region
  $region46: #{gcn_forward.1} parent=0 // pred_check
    _
  $region47: #{gcn_forward.1} parent=0 // pred_check_branch
    %45 = sbr.rel (0) target = $region49
  $region48: #{gcn_forward.1} parent=0 // pred_region
    _
  $region49: #{gcn_forward.1} parent=0 // pred_fallthru
    _
  // Predicated region
  $region50: #{gcn_forward.1} parent=0 // pred_check
    _
  $region51: #{gcn_forward.1} parent=0 // pred_check_branch
    %47 = sbr.rel (0) target = $region53
  $region52: #{gcn_forward.1} parent=0 // pred_region
    _
  $region53: #{gcn_forward.1} parent=0 // pred_fallthru
    _
  // Predicated region
  $region54: #{gcn_forward.1} parent=0 // pred_check
    _
  $region55: #{gcn_forward.1} parent=0 // pred_check_branch
    %49 = sbr.rel (0) target = $region57
  $region56: #{gcn_forward.1} parent=0 // pred_region
    _
  $region57: #{gcn_forward.1} parent=0 // pred_fallthru
    _
  // Predicated region
  $region58: #{gcn_forward.1} parent=0 // pred_check
    _
  $region59: #{gcn_forward.1} parent=0 // pred_check_branch
    %51 = sbr.rel (0) target = $region61
  $region60: #{gcn_forward.1} parent=0 // pred_region
    _
  $region61: #{gcn_forward.1} parent=0 // pred_fallthru
    _
  %v53 = vld [vmem:[%s0] sm:$0xf]
  %v54 = vld [vmem:[%s0 + $0x4] sm:$0xf]
  %v55 = vld [vmem:[%s1] sm:$0xf]
  %v56 = vld [vmem:[%s1 + $0x4] sm:$0xf]
  %v57 = vld [vmem:[%s4] sm:$0x1]
  %v59 = vperm.slane %v57, 0
  %v63 = vunpack.c.l.b16 %v53
  %v64 = vunpack.c.l.b16 %v54
  %v65 = vpack.c.b16 %v64, %v63
  %v68 = vunpack.c.l.b16 %v55
  %v69 = vunpack.c.l.b16 %v56
  %v70 = vpack.c.b16 %v69, %v68
  %vm72 = vcmask 130048
  %v74 = vsel %vm72, %v65, 0
  %76 = vmatpush.bf16.msra.mxu0 0
  %77 = vmatpush.bf16.msra.mxu0 0
  %78 = vmatpush.bf16.msra.mxu0 0
  %79 = vmatpush.bf16.msra.mxu0 0
  %80 = vmatpush.bf16.msra.mxu0 0
  %81 = vmatpush.bf16.msra.mxu0 0
  %82 = vmatpush.bf16.msra.mxu0 0
  %83 = vmatpush.bf16.msra.mxu0 %v70
  %84 = vmatmul.bf16.gmra.mxu0 %v74
  %v85 = vpop.f32.mrf.mxu0
  %v86 = vadd.f32 %v59, %v85
  %v87 = vpop.f32.mrf.mxu0
  %v88 = vadd.f32 %v59, %v87
  %89 = vdwg.mxu0
  %v90 = vmax.f32 %v86, 0.0
  %v91 = vmax.f32 %v88, 0.0
  %v92 = vpack.c.bf16 %v90, %v90
  %v93 = vpack.c.bf16 %v91, %v91
  %94 = vst [vmem:[#allocation2] sm:$0xf] %v92
  %95 = vst [vmem:[#allocation2 + $0x4] sm:$0xf] %v93
  %v96 = vld [vmem:[%s5] sm:$0xf]
  %v97 = vld [vmem:[%s5 + $0x4] sm:$0xf]
  %v98 = vld [vmem:[%s5 + $0x8] sm:$0xf]
  %v99 = vld [vmem:[%s5 + $0xc] sm:$0xf]
  %v100 = vld [vmem:[%s5 + $0x10] sm:$0xf]
  %v101 = vld [vmem:[%s5 + $0x14] sm:$0xf]
  %v102 = vld [vmem:[%s5 + $0x18] sm:$0xf]
  %v103 = vld [vmem:[%s5 + $0x1c] sm:$0xf]
  %v104 = vld [vmem:[%s5 + $0x20] sm:$0xf]
  %v105 = vld [vmem:[%s5 + $0x24] sm:$0xf]
  %v106 = vld [vmem:[%s5 + $0x28] sm:$0xf]
  %v107 = vld [vmem:[%s5 + $0x2c] sm:$0xf]
  %v108 = vld [vmem:[%s5 + $0x30] sm:$0xf]
  %v109 = vld [vmem:[%s5 + $0x34] sm:$0xf]
  %v110 = vld [vmem:[%s5 + $0x38] sm:$0xf]
  %v111 = vld [vmem:[%s5 + $0x3c] sm:$0xf]
  %v112 = vld [vmem:[%s6] sm:$0x1]
  %v114 = vperm.slane %v112, 0
  %v116 = vld [vmem:[#allocation2] sm:$0xf]
  %v117 = vld [vmem:[#allocation2 + $0x4] sm:$0xf]
  %v120 = vunpack.c.l.b16 %v116
  %v121 = vunpack.c.l.b16 %v117
  %v122 = vpack.c.b16 %v121, %v120
  %v140 = vunpack.c.l.b16 %v96
  %v141 = vunpack.c.l.b16 %v97
  %v142 = vunpack.c.l.b16 %v98
  %v143 = vunpack.c.l.b16 %v99
  %v144 = vunpack.c.l.b16 %v100
  %v145 = vunpack.c.l.b16 %v101
  %v146 = vunpack.c.l.b16 %v102
  %v147 = vunpack.c.l.b16 %v103
  %v148 = vunpack.c.l.b16 %v104
  %v149 = vunpack.c.l.b16 %v105
  %v150 = vunpack.c.l.b16 %v106
  %v151 = vunpack.c.l.b16 %v107
  %v152 = vunpack.c.l.b16 %v108
  %v153 = vunpack.c.l.b16 %v109
  %v154 = vunpack.c.l.b16 %v110
  %v155 = vunpack.c.l.b16 %v111
  %v156 = vpack.c.b16 %v141, %v140
  %v157 = vpack.c.b16 %v143, %v142
  %v158 = vpack.c.b16 %v145, %v144
  %v159 = vpack.c.b16 %v147, %v146
  %v160 = vpack.c.b16 %v149, %v148
  %v161 = vpack.c.b16 %v151, %v150
  %v162 = vpack.c.b16 %v153, %v152
  %v163 = vpack.c.b16 %v155, %v154
  %172 = vmatpush.bf16.msra.mxu0 %v163
  %173 = vmatpush.bf16.msra.mxu0 %v162
  %174 = vmatpush.bf16.msra.mxu0 %v161
  %175 = vmatpush.bf16.msra.mxu0 %v160
  %176 = vmatpush.bf16.msra.mxu0 %v159
  %177 = vmatpush.bf16.msra.mxu0 %v158
  %178 = vmatpush.bf16.msra.mxu0 %v157
  %179 = vmatpush.bf16.msra.mxu0 %v156
  %180 = vmatmul.bf16.gmra.mxu0 %v122
  %v181 = vpop.f32.mrf.mxu0
  %v182 = vadd.f32 0.0, %v181
  %v183 = vpop.f32.mrf.mxu0
  %v184 = vadd.f32 0.0, %v183
  %185 = vdwg.mxu0
  %v186 = vpack.c.bf16 %v184, %v182
  %187 = vmatpush.bf16.msra.mxu0 0
  %188 = vmatpush.bf16.msra.mxu0 0
  %189 = vmatpush.bf16.msra.mxu0 0
  %190 = vmatpush.bf16.msra.mxu0 0
  %191 = vmatpush.bf16.msra.mxu0 0
  %192 = vmatpush.bf16.msra.mxu0 0
  %193 = vmatpush.bf16.msra.mxu0 0
  %194 = vmatpush.bf16.msra.mxu0 %v186
  %195 = vmatmul.bf16.gmra.mxu0 %v74
  %v196 = vpop.f32.mrf.mxu0
  %v197 = vadd.f32 %v114, %v196
  %v198 = vpop.f32.mrf.mxu0
  %v199 = vadd.f32 %v114, %v198
  %200 = vdwg.mxu0
  %v201 = vmax.f32 %v197, 0.0
  %v202 = vmax.f32 %v199, 0.0
  %v203 = vpack.c.bf16 %v201, %v201
  %v204 = vpack.c.bf16 %v202, %v202
  %205 = vst [vmem:[#allocation2] sm:$0xf] %v203
  %206 = vst [vmem:[#allocation2 + $0x4] sm:$0xf] %v204
  %v207 = vld [vmem:[#allocation2] sm:$0xf]
  %v208 = vld [vmem:[#allocation2 + $0x4] sm:$0xf]
  %v211 = vunpack.c.l.b16 %v207
  %v212 = vunpack.c.l.b16 %v208
  %v213 = vpack.c.b16 %v212, %v211
  %215 = vmatpush.bf16.msra.mxu0 %v163
  %216 = vmatpush.bf16.msra.mxu0 %v162
  %217 = vmatpush.bf16.msra.mxu0 %v161
  %218 = vmatpush.bf16.msra.mxu0 %v160
  %219 = vmatpush.bf16.msra.mxu0 %v159
  %220 = vmatpush.bf16.msra.mxu0 %v158
  %221 = vmatpush.bf16.msra.mxu0 %v157
  %222 = vmatpush.bf16.msra.mxu0 %v156
  %223 = vmatmul.bf16.gmra.mxu0 %v213
  %v224 = vpop.f32.mrf.mxu0
  %v225 = vadd.f32 0.0, %v224
  %v226 = vpop.f32.mrf.mxu0
  %v227 = vadd.f32 0.0, %v226
  %228 = vdwg.mxu0
  %v229 = vpack.c.bf16 %v227, %v225
  %230 = vmatpush.bf16.msra.mxu0 0
  %231 = vmatpush.bf16.msra.mxu0 0
  %232 = vmatpush.bf16.msra.mxu0 0
  %233 = vmatpush.bf16.msra.mxu0 0
  %234 = vmatpush.bf16.msra.mxu0 0
  %235 = vmatpush.bf16.msra.mxu0 0
  %236 = vmatpush.bf16.msra.mxu0 0
  %237 = vmatpush.bf16.msra.mxu0 %v229
  %238 = vmatmul.bf16.gmra.mxu0 %v74
  %v239 = vpop.f32.mrf.mxu0
  %v240 = vadd.f32 %v114, %v239
  %v241 = vpop.f32.mrf.mxu0
  %v242 = vadd.f32 %v114, %v241
  %243 = vdwg.mxu0
  %v244 = vmax.f32 %v240, 0.0
  %v245 = vmax.f32 %v242, 0.0
  %v246 = vpack.c.bf16 %v244, %v244
  %v247 = vpack.c.bf16 %v245, %v245
  %248 = vst [vmem:[#allocation2] sm:$0xf] %v246
  %249 = vst [vmem:[#allocation2 + $0x4] sm:$0xf] %v247
  %v250 = vld [vmem:[%s2] sm:$0x1]
  %v251 = vld [vmem:[#allocation2] sm:$0xf]
  %v252 = vld [vmem:[#allocation2 + $0x4] sm:$0xf]
  %v255 = vunpack.c.l.b16 %v251
  %v256 = vunpack.c.l.b16 %v252
  %v257 = vpack.c.b16 %v256, %v255
  %v260 = vsel %vm72, %v250, 0
  %262 = vmatpush.bf16.msra.mxu0 0
  %263 = vmatpush.bf16.msra.mxu0 0
  %264 = vmatpush.bf16.msra.mxu0 0
  %265 = vmatpush.bf16.msra.mxu0 0
  %266 = vmatpush.bf16.msra.mxu0 0
  %267 = vmatpush.bf16.msra.mxu0 0
  %268 = vmatpush.bf16.msra.mxu0 0
  %269 = vmatpush.bf16.msra.mxu0 %v257
  %270 = vmatmul.bf16.gmra.mxu0 %v260
  %v271 = vpop.f32.mrf.mxu0
  %v272 = vadd.f32 0.0, %v271
  %v273 = vpop.f32.mrf.mxu0
  %274 = vdwg.mxu0
  %v275 = vld [vmem:[%s3] sm:$0x3]
  %277 = vset.pattern.permute.xlu0 0
  %278 = vperm.xlu0 %277, %v275
  %v279 = vpop.permute.xlu0 %278
  %v281 = vmul.f32 %v272, %v279
  %v282 = vunpack.c.l.bf16 %v251
  %v283 = vunpack.c.l.bf16 %v252
  %v284 = vunpack.c.l.bf16 %v250
  %v285 = vperm.slane %v284, 0
  %v286 = vlaneseq
  %v287 = vshrl.u32 %v286, 7
  %289 = vset.pattern.permute.xlu0 %v287
  %290 = vperm.xlu0 %289, %v285
  %v291 = vpop.permute.xlu0 %290
  %v292 = vlaneseq
  %v293 = vshrl.u32 %v292, 7
  %v294 = vadd.s32 %v293, 8
  %295 = vset.pattern.permute.xlu0 %v294
  %296 = vperm.xlu0 %295, %v285
  %v297 = vpop.permute.xlu0 %296
  %v298 = vperm.slane %v284, 1
  %v299 = vlaneseq
  %v300 = vshrl.u32 %v299, 7
  %302 = vset.pattern.permute.xlu0 %v300
  %303 = vperm.xlu0 %302, %v298
  %v304 = vpop.permute.xlu0 %303
  %v305 = vlaneseq
  %v306 = vshrl.u32 %v305, 7
  %v307 = vadd.s32 %v306, 8
  %308 = vset.pattern.permute.xlu0 %v307
  %309 = vperm.xlu0 %308, %v298
  %v310 = vpop.permute.xlu0 %309
  %v311 = vmul.f32 %v291, %v282
  %v312 = vmul.f32 %v297, %v283
  %v313 = vmul.f32 %v304, %v282
  %v314 = vmul.f32 %v310, %v283
  %v315 = vmax.f32 %v311, %v312
  %v316 = vrot.slane %v315, 4
  %v317 = vmax.f32 %v315, %v316
  %v318 = vrot.slane %v317, 2
  %v319 = vmax.f32 %v317, %v318
  %v320 = vrot.slane %v319, 1
  %v321 = vmax.f32 %v319, %v320
  %v322 = vmax.f32 %v313, %v314
  %v323 = vrot.slane %v322, 4
  %v324 = vmax.f32 %v322, %v323
  %v325 = vrot.slane %v324, 2
  %v326 = vmax.f32 %v324, %v325
  %v327 = vrot.slane %v326, 1
  %v328 = vmax.f32 %v326, %v327
  %v329 = vld [vmem:[%s7] sm:$0xff]
  %v330 = vld [vmem:[%s7 + $0x8] sm:$0xff]
  %v331 = vld [vmem:[%s7 + $0x10] sm:$0xff]
  %v332 = vld [vmem:[%s7 + $0x18] sm:$0xff]
  %v333 = vld [vmem:[%s7 + $0x20] sm:$0xff]
  %v334 = vld [vmem:[%s7 + $0x28] sm:$0xff]
  %v335 = vld [vmem:[%s7 + $0x30] sm:$0xff]
  %v336 = vld [vmem:[%s7 + $0x38] sm:$0xff]
  %v337 = vld [vmem:[%s7 + $0x40] sm:$0xff]
  %v338 = vld [vmem:[%s7 + $0x48] sm:$0xff]
  %v339 = vld [vmem:[%s7 + $0x50] sm:$0xff]
  %v340 = vld [vmem:[%s7 + $0x58] sm:$0xff]
  %v341 = vld [vmem:[%s7 + $0x60] sm:$0xff]
  %v342 = vld [vmem:[%s7 + $0x68] sm:$0xff]
  %v343 = vld [vmem:[%s7 + $0x70] sm:$0xff]
  %v344 = vld [vmem:[%s7 + $0x78] sm:$0xff]
  %v345 = vld [vmem:[%s8] sm:$0xff]
  %v346 = vld [vmem:[%s8 + $0x8] sm:$0xff]
  %v347 = vld [vmem:[%s8 + $0x10] sm:$0xff]
  %v348 = vld [vmem:[%s8 + $0x18] sm:$0xff]
  %v349 = vld [vmem:[%s8 + $0x20] sm:$0xff]
  %v350 = vld [vmem:[%s8 + $0x28] sm:$0xff]
  %v351 = vld [vmem:[%s8 + $0x30] sm:$0xff]
  %v352 = vld [vmem:[%s8 + $0x38] sm:$0xff]
  %v353 = vld [vmem:[%s8 + $0x40] sm:$0xff]
  %v354 = vld [vmem:[%s8 + $0x48] sm:$0xff]
  %v355 = vld [vmem:[%s8 + $0x50] sm:$0xff]
  %v356 = vld [vmem:[%s8 + $0x58] sm:$0xff]
  %v357 = vld [vmem:[%s8 + $0x60] sm:$0xff]
  %v358 = vld [vmem:[%s8 + $0x68] sm:$0xff]
  %v359 = vld [vmem:[%s8 + $0x70] sm:$0xff]
  %v360 = vld [vmem:[%s8 + $0x78] sm:$0xff]
  %vm363 = vcmask 1041409
  %v364 = vsel %vm363, %v328, %v321
  %366 = vmatpush.msra.mxu0 %v360
  %367 = vmatpush.msra.mxu0 %v359
  %368 = vmatpush.msra.mxu0 %v358
  %369 = vmatpush.msra.mxu0 %v357
  %370 = vmatpush.msra.mxu0 %v356
  %371 = vmatpush.msra.mxu0 %v355
  %372 = vmatpush.msra.mxu0 %v354
  %373 = vmatpush.msra.mxu0 %v353
  %374 = vmatpush.msra.mxu0 %v352
  %375 = vmatpush.msra.mxu0 %v351
  %376 = vmatpush.msra.mxu0 %v350
  %377 = vmatpush.msra.mxu0 %v349
  %378 = vmatpush.msra.mxu0 %v348
  %379 = vmatpush.msra.mxu0 %v347
  %380 = vmatpush.msra.mxu0 %v346
  %381 = vmatpush.msra.mxu0 %v345
  %382 = vmatmul.f32.gmra.mxu0 %v364
  %v383 = vpop.f32.mrf.mxu0
  %v384 = vadd.f32 0.0, %v383
  %385 = vdwg.mxu0
  %386 = vmatpush.msra.mxu0 %v344
  %387 = vmatpush.msra.mxu0 %v343
  %388 = vmatpush.msra.mxu0 %v342
  %389 = vmatpush.msra.mxu0 %v341
  %390 = vmatpush.msra.mxu0 %v340
  %391 = vmatpush.msra.mxu0 %v339
  %392 = vmatpush.msra.mxu0 %v338
  %393 = vmatpush.msra.mxu0 %v337
  %394 = vmatpush.msra.mxu0 %v336
  %395 = vmatpush.msra.mxu0 %v335
  %396 = vmatpush.msra.mxu0 %v334
  %397 = vmatpush.msra.mxu0 %v333
  %398 = vmatpush.msra.mxu0 %v332
  %399 = vmatpush.msra.mxu0 %v331
  %400 = vmatpush.msra.mxu0 %v330
  %401 = vmatpush.msra.mxu0 %v329
  %402 = vmatmul.f32.gmra.mxu0 %v281
  %v403 = vpop.f32.mrf.mxu0
  %v404 = vadd.f32 %v384, %v403
  %405 = vdwg.mxu0
  %v406 = vld [vmem:[%s9] sm:$0xff]
  %v407 = vld [vmem:[%s9 + $0x8] sm:$0xff]
  %v408 = vld [vmem:[%s9 + $0x10] sm:$0xff]
  %v409 = vld [vmem:[%s9 + $0x18] sm:$0xff]
  %v410 = vld [vmem:[%s9 + $0x20] sm:$0xff]
  %v411 = vld [vmem:[%s9 + $0x28] sm:$0xff]
  %v412 = vld [vmem:[%s9 + $0x30] sm:$0xff]
  %v413 = vld [vmem:[%s9 + $0x38] sm:$0xff]
  %v414 = vld [vmem:[%s9 + $0x40] sm:$0xff]
  %v415 = vld [vmem:[%s9 + $0x48] sm:$0xff]
  %v416 = vld [vmem:[%s9 + $0x50] sm:$0xff]
  %v417 = vld [vmem:[%s9 + $0x58] sm:$0xff]
  %v418 = vld [vmem:[%s9 + $0x60] sm:$0xff]
  %v419 = vld [vmem:[%s9 + $0x68] sm:$0xff]
  %v420 = vld [vmem:[%s9 + $0x70] sm:$0xff]
  %v421 = vld [vmem:[%s9 + $0x78] sm:$0xff]
  %422 = vmatpush.msra.mxu0 %v421
  %423 = vmatpush.msra.mxu0 %v420
  %424 = vmatpush.msra.mxu0 %v419
  %425 = vmatpush.msra.mxu0 %v418
  %426 = vmatpush.msra.mxu0 %v417
  %427 = vmatpush.msra.mxu0 %v416
  %428 = vmatpush.msra.mxu0 %v415
  %429 = vmatpush.msra.mxu0 %v414
  %430 = vmatpush.msra.mxu0 %v413
  %431 = vmatpush.msra.mxu0 %v412
  %432 = vmatpush.msra.mxu0 %v411
  %433 = vmatpush.msra.mxu0 %v410
  %434 = vmatpush.msra.mxu0 %v409
  %435 = vmatpush.msra.mxu0 %v408
  %436 = vmatpush.msra.mxu0 %v407
  %437 = vmatpush.msra.mxu0 %v406
  %438 = vmatmul.f32.gmra.mxu0 %v272
  %v439 = vpop.f32.mrf.mxu0
  %v440 = vadd.f32 0.0, %v439
  %441 = vdwg.mxu0
  %v442 = vadd.f32 %v404, %v440
  %v443 = vld [vmem:[%s10] sm:$0x1]
  %v445 = vperm.slane %v443, 0
  %v447 = vadd.f32 %v442, %v445
  %v448 = vmax.f32 %v447, 0.0
  %v449 = vld [vmem:[%s11] sm:$0xff]
  %v450 = vld [vmem:[%s11 + $0x8] sm:$0xff]
  %v451 = vld [vmem:[%s11 + $0x10] sm:$0xff]
  %v452 = vld [vmem:[%s11 + $0x18] sm:$0xff]
  %v453 = vld [vmem:[%s11 + $0x20] sm:$0xff]
  %v454 = vld [vmem:[%s11 + $0x28] sm:$0xff]
  %v455 = vld [vmem:[%s11 + $0x30] sm:$0xff]
  %v456 = vld [vmem:[%s11 + $0x38] sm:$0xff]
  %v457 = vld [vmem:[%s11 + $0x40] sm:$0xff]
  %v458 = vld [vmem:[%s11 + $0x48] sm:$0xff]
  %v459 = vld [vmem:[%s11 + $0x50] sm:$0xff]
  %v460 = vld [vmem:[%s11 + $0x58] sm:$0xff]
  %v461 = vld [vmem:[%s12] sm:$0x1]
  %v463 = vperm.slane %v461, 0
  %vm465 = vcmask 785408
  %v467 = vsel %vm465, %v448, 0
  %469 = vmatpush.msra.mxu0 0.0
  %470 = vmatpush.msra.mxu0 0.0
  %471 = vmatpush.msra.mxu0 0.0
  %472 = vmatpush.msra.mxu0 0.0
  %473 = vmatpush.msra.mxu0 %v460
  %474 = vmatpush.msra.mxu0 %v459
  %475 = vmatpush.msra.mxu0 %v458
  %476 = vmatpush.msra.mxu0 %v457
  %477 = vmatpush.msra.mxu0 %v456
  %478 = vmatpush.msra.mxu0 %v455
  %479 = vmatpush.msra.mxu0 %v454
  %480 = vmatpush.msra.mxu0 %v453
  %481 = vmatpush.msra.mxu0 %v452
  %482 = vmatpush.msra.mxu0 %v451
  %483 = vmatpush.msra.mxu0 %v450
  %484 = vmatpush.msra.mxu0 %v449
  %485 = vmatmul.f32.gmra.mxu0 %v467
  %v486 = vpop.f32.mrf.mxu0
  %v487 = vadd.f32 %v463, %v486
  %488 = vdwg.mxu0
  %v489 = vmax.f32 %v487, 0.0
  %v490 = vld [vmem:[%s13] sm:$0xff]
  %v491 = vld [vmem:[%s13 + $0x8] sm:$0xff]
  %v492 = vld [vmem:[%s13 + $0x10] sm:$0xff]
  %v493 = vld [vmem:[%s13 + $0x18] sm:$0xff]
  %v494 = vld [vmem:[#allocation3] sm:$0x1]
  %v496 = vperm.slane %v494, 0
  %vm498 = vcmask 261120
  %v500 = vsel %vm498, %v489, 0
  %502 = vmatpush.msra.mxu0 0.0
  %503 = vmatpush.msra.mxu0 0.0
  %504 = vmatpush.msra.mxu0 0.0
  %505 = vmatpush.msra.mxu0 0.0
  %506 = vmatpush.msra.mxu0 0.0
  %507 = vmatpush.msra.mxu0 0.0
  %508 = vmatpush.msra.mxu0 0.0
  %509 = vmatpush.msra.mxu0 0.0
  %510 = vmatpush.msra.mxu0 0.0
  %511 = vmatpush.msra.mxu0 0.0
  %512 = vmatpush.msra.mxu0 0.0
  %513 = vmatpush.msra.mxu0 0.0
  %514 = vmatpush.msra.mxu0 %v493
  %515 = vmatpush.msra.mxu0 %v492
  %516 = vmatpush.msra.mxu0 %v491
  %517 = vmatpush.msra.mxu0 %v490
  %518 = vmatmul.f32.gmra.mxu0 %v500
  %v519 = vpop.f32.mrf.mxu0
  %v520 = vadd.f32 %v496, %v519
  %521 = vdwg.mxu0
  %v522 = vmin.f32 %v520, 0.0
  %v523 = vmul.f32 %v522, 1.442695
  %v524 = vpow.pop %v523
  %v525 = vand.u32 2147483647, %v520
  %v526 = vsub.f32 0.0, %v525
  %v527 = vmul.f32 %v526, 1.442695
  %v528 = vpow.pop %v527
  %v529 = vadd.f32 %v528, 1.0
  %v530 = vrcp.pop %v529
  %v531 = vmul.f32 %v529, %v530
  %v532 = vsub.f32 1.0, %v531
  %v533 = vmul.f32 %v530, %v532
  %v534 = vadd.f32 %v530, %v533
  %vm535 = vweird.f32 %v529
  %vm536 = vweird.f32 %v530
  %vm537 = vmor %vm535, %vm536
  %v538 = vsel %vm537, %v530, %v534
  %v539 = vand.u32 2147483647, %v529
  %vm540 = vcmp.eq.f32.partialorder %v539, 8.507059e+37
  %v541 = vand.u32 %v529, 2147483648
  %v542 = vor.u32 1.1754944e-38, %v541
  %v543 = vsel %vm540, %v542, %v538
  %v544 = vmul.f32 %v524, %v543
  %vm545 = vcmask 1024
  %546 = vst.msk [vmem:[%s15] sm:$0x3] %vm545, %v544
  // Predicated region
  $region62: #{gcn_forward.1} parent=0 // pred_check
    _
  $region63: #{gcn_forward.1} parent=0 // pred_check_branch
    %548 = sbr.rel (0) target = $region65
  $region64: #{gcn_forward.1} parent=0 // pred_region
    _
  $region65: #{gcn_forward.1} parent=0 // pred_fallthru
    _
  // Predicated region
  $region66: #{gcn_forward.1} parent=0 // pred_check
    _
  $region67: #{gcn_forward.1} parent=0 // pred_check_branch
    %550 = sbr.rel (0) target = $region69
  $region68: #{gcn_forward.1} parent=0 // pred_region
    _
  $region69: #{gcn_forward.1} parent=0 // pred_fallthru
    _

</llo_original>
